<compile_context>
chip_gen: v5e
topology: v5e:2x2
jax: 0.10.0
libtpu: 0.0.40
codegen_flags: <defaults>
</compile_context>

<pallas_src>
import functools

import jax
import jax.numpy as jnp
from jax import lax
from jax.experimental import pallas as pl
from jax.experimental.pallas import tpu as pltpu


_LANES = 128
_MAX_TILE_ROWS = 256          # 32K pixels per grid step (keeps temporaries modest on v7x)
_UNROLL_CLASS_LIMIT = 64      # static python loop over classes up to this many


def _focal_loss_kernel(x_ref, t_ref, a_ref, o_ref, acc_ref, *,
                       gamma, num_classes, valid_pixels, tile_pixels,
                       tiles_per_part):
    sp = pl.program_id(2)

    @pl.when(sp == 0)
    def _():
        acc_ref[...] = jnp.zeros_like(acc_ref)

    C = num_classes
    t = t_ref[0, 0]                                   # (tR, 128) int32
    zeros = jnp.zeros(t.shape, jnp.float32)

    # ---- pass 1: per-pixel max over classes (dense (tR,128) VPU ops) -------
    if C <= _UNROLL_CLASS_LIMIT:
        m = x_ref[0, 0].astype(jnp.float32)
        for c in range(1, C):
            m = jnp.maximum(m, x_ref[0, c].astype(jnp.float32))
    else:
        m = lax.fori_loop(
            1, C,
            lambda c, acc: jnp.maximum(acc, x_ref[0, c].astype(jnp.float32)),
            x_ref[0, 0].astype(jnp.float32))

    # ---- pass 2: sum(exp), gather x[target] and alpha[target] --------------
    if C <= _UNROLL_CLASS_LIMIT:
        s, xt, at = zeros, zeros, zeros
        for c in range(C):
            xc = x_ref[0, c].astype(jnp.float32)
            s = s + jnp.exp(xc - m)
            sel = t == c
            xt = jnp.where(sel, xc, xt)
            at = jnp.where(sel, a_ref[c], at)         # alpha[c] is an SMEM scalar
    else:
        def body(c, carry):
            s_, xt_, at_ = carry
            xc = x_ref[0, c].astype(jnp.float32)
            sel = t == c
            return (s_ + jnp.exp(xc - m),
                    jnp.where(sel, xc, xt_),
                    jnp.where(sel, a_ref[c], at_))
        s, xt, at = lax.fori_loop(0, C, body, (zeros, zeros, zeros))

    logpt = xt - (m + jnp.log(s))                     # log_softmax(x)[target]
    pt = jnp.exp(logpt)
    logpt = logpt * at                                # alpha weighting (after pt, as in torch)

    # (1 - pt) ** gamma : repeated multiply for small integer gamma.
    # (clamp at 0 guards the non-integer pow path against fp rounding; torch would NaN)
    one_m_pt = jnp.maximum(1.0 - pt, 0.0)
    g = float(gamma)
    if g == 0.0:
        mod = jnp.ones_like(pt)
    elif g.is_integer() and 0.0 < g <= 8.0:
        mod = one_m_pt
        for _ in range(int(g) - 1):
            mod = mod * one_m_pt
    else:
        mod = jnp.power(one_m_pt, g)
    loss = -mod * logpt                               # (tR, 128)

    # ---- accumulate; mask only boundary / overflow-duplicate tiles ---------
    logical_tile = pl.program_id(0) * tiles_per_part + sp
    tile_start = logical_tile * tile_pixels
    is_full = (tile_start + tile_pixels) <= valid_pixels

    @pl.when(is_full)
    def _():
        acc_ref[...] += loss

    @pl.when(jnp.logical_not(is_full))
    def _():
        # NOTE: overflow duplicate tiles (clamped index_map) always land here
        # because their logical pixel range starts at >= valid_pixels, so they
        # contribute exactly zero.
        pix = (tile_start
               + lax.broadcasted_iota(jnp.int32, loss.shape, 0) * _LANES
               + lax.broadcasted_iota(jnp.int32, loss.shape, 1))
        acc_ref[...] += jnp.where(pix < valid_pixels, loss, 0.0)

    @pl.when(sp == pl.num_programs(2) - 1)
    def _():
        o_ref[...] = jnp.reshape(jnp.sum(acc_ref[...]), (1, 1, 1, 1))


def _vmem_limit_bytes():
    try:
        cap = int(pltpu.get_tpu_info().vmem_capacity_bytes)
    except Exception:
        cap = 64 * 1024 * 1024                        # conservative (v7x per-TC)
    # leave headroom for compiler scratch / spilled temporaries
    return int(min(max(cap - 16 * 1024 * 1024, 32 * 1024 * 1024),
                   96 * 1024 * 1024))


def _multi_tensorcore():
    # Only multi-TensorCore chips benefit from the part split (v7x; v4/v5p megacore).
    try:
        kind = jax.devices()[0].device_kind.lower()
    except Exception:
        return False
    return ("v4" in kind) or ("v5p" in kind) or ("7" in kind)


def _choose_tile_rows(C, in_itemsize, vmem_limit):
    # bytes per pixel column: double-buffered logits + targets, dense f32
    # accumulator, ~8 live f32 temporaries (m, sum_exp, xt, at, pt, loss, ...)
    per_pix = 2 * C * in_itemsize + 2 * 4 + 4 + 8 * 4
    budget = max(vmem_limit // 2, 4 * 1024 * 1024)
    rows = (budget // (per_pix * _LANES)) // 8 * 8
    return int(max(8, min(rows, _MAX_TILE_ROWS)))


def focal_loss(x, target, *, gamma=0.0, alpha=None, size_average=True,
               tile_rows=None):
    """Pallas implementation of FocalLoss.forward.

    x:      float array (f32 or bf16), (N, C) or (N, C, *spatial) (NCHW)
    target: int array, (N,) or (N, *spatial)
    alpha:  None, float, or list of per-class weights (mirrors the module)
    """
    if x.ndim > 2:
        B, C = int(x.shape[0]), int(x.shape[1])
        S = 1
        for d in x.shape[2:]:
            S *= int(d)
        x3 = x.reshape(B, C, S)                       # NCHW kept as-is (no transpose)
        t3 = target.reshape(B, 1, S).astype(jnp.int32)
    else:
        C = int(x.shape[1])
        B, S = 1, int(x.shape[0])
        x3 = jnp.transpose(x)[None]                   # (1, C, N)
        t3 = target.reshape(1, 1, S).astype(jnp.int32)

    # Pixel-dense layout: (B, C, rows, 128).  Class is a leading (non-vreg) dim;
    # pixels fill both vreg axes.  The last-dim split is free when S % 128 == 0;
    # otherwise a tiny (<128-pixel) alignment pad is added and masked in-kernel.
    R = -(-S // _LANES)
    S_128 = R * _LANES
    if S_128 != S:
        x3 = jnp.pad(x3, ((0, 0), (0, 0), (0, S_128 - S)))
        t3 = jnp.pad(t3, ((0, 0), (0, 0), (0, S_128 - S)))
    x4 = x3.reshape(B, C, R, _LANES)
    t4 = t3.reshape(B, 1, R, _LANES)

    # alpha handling mirrors FocalLoss.__init__; kept in SMEM inside the kernel
    if alpha is None:
        alpha_vec = jnp.ones((C,), dtype=jnp.float32)
    elif isinstance(alpha, (float, int)):
        assert C == 2, "scalar alpha implies 2 classes"
        alpha_vec = jnp.array([float(alpha), 1.0 - float(alpha)], jnp.float32)
    else:
        alpha_vec = jnp.asarray(alpha, dtype=jnp.float32).reshape(C)

    vmem_limit = _vmem_limit_bytes()
    tR = tile_rows or _choose_tile_rows(C, x.dtype.itemsize, vmem_limit)
    tR = R if tR >= R else max(8, (tR // 8) * 8)
    tile_pixels = tR * _LANES
    n_tiles = -(-R // tR)                              # no tile-multiple padding

    P = 2 if (n_tiles > 1 and _multi_tensorcore()) else 1
    tiles_per_part = -(-n_tiles // P)

    def tile_idx(p, sp):
        # clamp overflow steps to the last real tile; they are fully masked
        return jnp.minimum(p * tiles_per_part + sp, n_tiles - 1)

    kernel = functools.partial(
        _focal_loss_kernel, gamma=float(gamma), num_classes=C,
        valid_pixels=S, tile_pixels=tile_pixels, tiles_per_part=tiles_per_part)

    partials = pl.pallas_call(
        kernel,
        out_shape=jax.ShapeDtypeStruct((P, B, 1, 1), jnp.float32),
        grid_spec=pltpu.PrefetchScalarGridSpec(
            num_scalar_prefetch=0,
            grid=(P, B, tiles_per_part),
            in_specs=[
                pl.BlockSpec((1, C, tR, _LANES),
                             lambda p, b, sp: (b, 0, tile_idx(p, sp), 0)),
                pl.BlockSpec((1, 1, tR, _LANES),
                             lambda p, b, sp: (b, 0, tile_idx(p, sp), 0)),
                pl.BlockSpec(memory_space=pltpu.MemorySpace.SMEM),
            ],
            out_specs=pl.BlockSpec((1, 1, 1, 1), lambda p, b, sp: (p, b, 0, 0)),
            scratch_shapes=[pltpu.VMEM((tR, _LANES), jnp.float32)],
        ),
        compiler_params=pltpu.CompilerParams(
            dimension_semantics=("parallel", "parallel", "arbitrary"),
            vmem_limit_bytes=vmem_limit,
        ),
    )(x4, t4, alpha_vec)

    total = jnp.sum(partials)
    if size_average:
        return total / float(B * S)
    return total


def _focal_loss_ref(x, target, *, gamma, alpha, size_average):
    # pure-JAX reference mirroring the PyTorch code
    if x.ndim > 2:
        N, C = x.shape[0], x.shape[1]
        x = jnp.transpose(x.reshape(N, C, -1), (0, 2, 1)).reshape(-1, C)
    else:
        C = x.shape[1]
    t = target.reshape(-1)
    logp = jax.nn.log_softmax(x, axis=-1)
    logpt = jnp.take_along_axis(logp, t[:, None], axis=1)[:, 0]
    pt = jnp.exp(logpt)
    if alpha is not None:
        a = jnp.asarray(alpha, dtype=x.dtype)
        logpt = logpt * a[t]
    loss = -1.0 * (1.0 - pt) ** gamma * logpt
    return loss.mean() if size_average else loss.sum()


if __name__ == "__main__":
    key = jax.random.PRNGKey(0)
    k1, k2 = jax.random.split(key)

    # small NCHW example: batch=2, classes=4, spatial=16x16
    N, C, H, W = 2, 4, 16, 16
    x = jax.random.normal(k1, (N, C, H, W), dtype=jnp.float32)
    target = jax.random.randint(k2, (N, H, W), 0, C, dtype=jnp.int32)

    gamma = 2.0
    alpha = [0.1, 0.2, 0.3, 0.4]   # per-class weights (deterministic, in-script)
    size_average = True

    out = focal_loss(x, target, gamma=gamma, alpha=alpha, size_average=size_average)
    out = jax.block_until_ready(out)

    ref = _focal_loss_ref(x, target, gamma=gamma, alpha=alpha, size_average=size_average)
    assert jnp.allclose(out, ref, rtol=1e-5, atol=1e-5), (out, ref)

    print("KERNEL_OK")
</pallas_src>

<mosaic_0001>
module attributes {stable_mosaic.version = 11 : i64} {
  func.func @_focal_loss_kernel(%arg0: i32, %arg1: i32, %arg2: i32, %arg3: memref<1x4x2x128xf32, #tpu.memory_space<vmem>>, %arg4: memref<1x1x2x128xi32, #tpu.memory_space<vmem>>, %arg5: memref<4xf32, #tpu.memory_space<smem>>, %arg6: memref<1x1x1x1xf32, #tpu.memory_space<vmem>>, %arg7: memref<2x128xf32, #tpu.memory_space<vmem>>) attributes {dimension_semantics = [#tpu.dimension_semantics<parallel>, #tpu.dimension_semantics<parallel>, #tpu.dimension_semantics<arbitrary>], iteration_bounds = array<i64: 1, 2, 1>, scalar_prefetch = 0 : i64, scratch_operands = 1 : i64, tpu.core_type = #tpu.core_type<tc>, window_params = [{transform_indices = @transform_0, window_bounds = array<i64: 1, 4, 2, 128>}, {transform_indices = @transform_1, window_bounds = array<i64: 1, 1, 2, 128>}, {transform_indices = @transform_2, window_bounds = array<i64: 4>}, {transform_indices = @transform_3, window_bounds = array<i64: 1, 1, 1, 1>}]} {
    %c0_i32 = arith.constant 0 : i32
    %0 = arith.cmpi eq, %arg2, %c0_i32 : i32
    %1 = arith.extui %0 : i1 to i32
    %c0_i32_0 = arith.constant 0 : i32
    %2 = arith.cmpi ne, %1, %c0_i32_0 : i32
    scf.if %2 {
      %cst_48 = arith.constant 0.000000e+00 : f32
      %87 = vector.broadcast %cst_48 : f32 to vector<2x128xf32>
      %c0_49 = arith.constant 0 : index
      %c0_50 = arith.constant 0 : index
      %88 = vector.load %arg7[%c0_49, %c0_50] : memref<2x128xf32, #tpu.memory_space<vmem>>, vector<2x128xf32>
      tpu.vector_store %arg7[%c0_49, %c0_50], %87 {strides = array<i32>} : memref<2x128xf32, #tpu.memory_space<vmem>>, vector<2x128xf32>,
    } else {
    }
    %c0 = arith.constant 0 : index
    %c0_1 = arith.constant 0 : index
    %c0_2 = arith.constant 0 : index
    %c0_3 = arith.constant 0 : index
    %3 = vector.load %arg4[%c0, %c0_1, %c0_2, %c0_3] : memref<1x1x2x128xi32, #tpu.memory_space<vmem>>, vector<1x1x2x128xi32>
    %4 = vector.shape_cast %3 : vector<1x1x2x128xi32> to vector<2x128xi32>
    %cst = arith.constant 0.000000e+00 : f32
    %5 = vector.broadcast %cst : f32 to vector<2x128xf32>
    %c0_4 = arith.constant 0 : index
    %c0_5 = arith.constant 0 : index
    %c0_6 = arith.constant 0 : index
    %c0_7 = arith.constant 0 : index
    %6 = vector.load %arg3[%c0_4, %c0_5, %c0_6, %c0_7] : memref<1x4x2x128xf32, #tpu.memory_space<vmem>>, vector<1x1x2x128xf32>
    %7 = vector.shape_cast %6 : vector<1x1x2x128xf32> to vector<2x128xf32>
    %c0_8 = arith.constant 0 : index
    %c1 = arith.constant 1 : index
    %c0_9 = arith.constant 0 : index
    %c0_10 = arith.constant 0 : index
    %8 = vector.load %arg3[%c0_8, %c1, %c0_9, %c0_10] : memref<1x4x2x128xf32, #tpu.memory_space<vmem>>, vector<1x1x2x128xf32>
    %9 = vector.shape_cast %8 : vector<1x1x2x128xf32> to vector<2x128xf32>
    %10 = arith.maximumf %7, %9 : vector<2x128xf32>
    %c0_11 = arith.constant 0 : index
    %c2 = arith.constant 2 : index
    %c0_12 = arith.constant 0 : index
    %c0_13 = arith.constant 0 : index
    %11 = vector.load %arg3[%c0_11, %c2, %c0_12, %c0_13] : memref<1x4x2x128xf32, #tpu.memory_space<vmem>>, vector<1x1x2x128xf32>
    %12 = vector.shape_cast %11 : vector<1x1x2x128xf32> to vector<2x128xf32>
    %13 = arith.maximumf %10, %12 : vector<2x128xf32>
    %c0_14 = arith.constant 0 : index
    %c3 = arith.constant 3 : index
    %c0_15 = arith.constant 0 : index
    %c0_16 = arith.constant 0 : index
    %14 = vector.load %arg3[%c0_14, %c3, %c0_15, %c0_16] : memref<1x4x2x128xf32, #tpu.memory_space<vmem>>, vector<1x1x2x128xf32>
    %15 = vector.shape_cast %14 : vector<1x1x2x128xf32> to vector<2x128xf32>
    %16 = arith.maximumf %13, %15 : vector<2x128xf32>
    %c0_17 = arith.constant 0 : index
    %c0_18 = arith.constant 0 : index
    %c0_19 = arith.constant 0 : index
    %c0_20 = arith.constant 0 : index
    %17 = vector.load %arg3[%c0_17, %c0_18, %c0_19, %c0_20] : memref<1x4x2x128xf32, #tpu.memory_space<vmem>>, vector<1x1x2x128xf32>
    %18 = vector.shape_cast %17 : vector<1x1x2x128xf32> to vector<2x128xf32>
    %19 = arith.subf %18, %16 : vector<2x128xf32>
    %20 = math.exp %19 : vector<2x128xf32>
    %21 = arith.addf %5, %20 : vector<2x128xf32>
    %c0_i32_21 = arith.constant 0 : i32
    %22 = vector.broadcast %c0_i32_21 : i32 to vector<2x128xi32>
    %23 = arith.cmpi eq, %4, %22 : vector<2x128xi32>
    %24 = arith.select %23, %18, %5 : vector<2x128xi1>, vector<2x128xf32>
    %c0_22 = arith.constant 0 : index
    %25 = memref.load %arg5[%c0_22] : memref<4xf32, #tpu.memory_space<smem>>
    %26 = vector.broadcast %25 : f32 to vector<2x128xf32>
    %27 = arith.select %23, %26, %5 : vector<2x128xi1>, vector<2x128xf32>
    %c0_23 = arith.constant 0 : index
    %c1_24 = arith.constant 1 : index
    %c0_25 = arith.constant 0 : index
    %c0_26 = arith.constant 0 : index
    %28 = vector.load %arg3[%c0_23, %c1_24, %c0_25, %c0_26] : memref<1x4x2x128xf32, #tpu.memory_space<vmem>>, vector<1x1x2x128xf32>
    %29 = vector.shape_cast %28 : vector<1x1x2x128xf32> to vector<2x128xf32>
    %30 = arith.subf %29, %16 : vector<2x128xf32>
    %31 = math.exp %30 : vector<2x128xf32>
    %32 = arith.addf %21, %31 : vector<2x128xf32>
    %c1_i32 = arith.constant 1 : i32
    %33 = vector.broadcast %c1_i32 : i32 to vector<2x128xi32>
    %34 = arith.cmpi eq, %4, %33 : vector<2x128xi32>
    %35 = arith.select %34, %29, %24 : vector<2x128xi1>, vector<2x128xf32>
    %c1_27 = arith.constant 1 : index
    %36 = memref.load %arg5[%c1_27] : memref<4xf32, #tpu.memory_space<smem>>
    %37 = vector.broadcast %36 : f32 to vector<2x128xf32>
    %38 = arith.select %34, %37, %27 : vector<2x128xi1>, vector<2x128xf32>
    %c0_28 = arith.constant 0 : index
    %c2_29 = arith.constant 2 : index
    %c0_30 = arith.constant 0 : index
    %c0_31 = arith.constant 0 : index
    %39 = vector.load %arg3[%c0_28, %c2_29, %c0_30, %c0_31] : memref<1x4x2x128xf32, #tpu.memory_space<vmem>>, vector<1x1x2x128xf32>
    %40 = vector.shape_cast %39 : vector<1x1x2x128xf32> to vector<2x128xf32>
    %41 = arith.subf %40, %16 : vector<2x128xf32>
    %42 = math.exp %41 : vector<2x128xf32>
    %43 = arith.addf %32, %42 : vector<2x128xf32>
    %c2_i32 = arith.constant 2 : i32
    %44 = vector.broadcast %c2_i32 : i32 to vector<2x128xi32>
    %45 = arith.cmpi eq, %4, %44 : vector<2x128xi32>
    %46 = arith.select %45, %40, %35 : vector<2x128xi1>, vector<2x128xf32>
    %c2_32 = arith.constant 2 : index
    %47 = memref.load %arg5[%c2_32] : memref<4xf32, #tpu.memory_space<smem>>
    %48 = vector.broadcast %47 : f32 to vector<2x128xf32>
    %49 = arith.select %45, %48, %38 : vector<2x128xi1>, vector<2x128xf32>
    %c0_33 = arith.constant 0 : index
    %c3_34 = arith.constant 3 : index
    %c0_35 = arith.constant 0 : index
    %c0_36 = arith.constant 0 : index
    %50 = vector.load %arg3[%c0_33, %c3_34, %c0_35, %c0_36] : memref<1x4x2x128xf32, #tpu.memory_space<vmem>>, vector<1x1x2x128xf32>
    %51 = vector.shape_cast %50 : vector<1x1x2x128xf32> to vector<2x128xf32>
    %52 = arith.subf %51, %16 : vector<2x128xf32>
    %53 = math.exp %52 : vector<2x128xf32>
    %54 = arith.addf %43, %53 : vector<2x128xf32>
    %c3_i32 = arith.constant 3 : i32
    %55 = vector.broadcast %c3_i32 : i32 to vector<2x128xi32>
    %56 = arith.cmpi eq, %4, %55 : vector<2x128xi32>
    %57 = arith.select %56, %51, %46 : vector<2x128xi1>, vector<2x128xf32>
    %c3_37 = arith.constant 3 : index
    %58 = memref.load %arg5[%c3_37] : memref<4xf32, #tpu.memory_space<smem>>
    %59 = vector.broadcast %58 : f32 to vector<2x128xf32>
    %60 = arith.select %56, %59, %49 : vector<2x128xi1>, vector<2x128xf32>
    %61 = math.log %54 : vector<2x128xf32>
    %62 = arith.addf %16, %61 : vector<2x128xf32>
    %63 = arith.subf %57, %62 : vector<2x128xf32>
    %64 = math.exp %63 : vector<2x128xf32>
    %65 = arith.mulf %63, %60 : vector<2x128xf32>
    %cst_38 = arith.constant 1.000000e+00 : f32
    %66 = vector.broadcast %cst_38 : f32 to vector<2x128xf32>
    %67 = arith.subf %66, %64 : vector<2x128xf32>
    %cst_39 = arith.constant 0.000000e+00 : f32
    %68 = vector.broadcast %cst_39 : f32 to vector<2x128xf32>
    %69 = arith.maximumf %67, %68 : vector<2x128xf32>
    %70 = arith.mulf %69, %69 : vector<2x128xf32>
    %cst_40 = arith.constant 0.000000e+00 : f32
    %71 = vector.broadcast %cst_40 : f32 to vector<2x128xf32>
    %72 = arith.subf %71, %70 : vector<2x128xf32>
    %73 = arith.mulf %72, %65 : vector<2x128xf32>
    %c1_i32_41 = arith.constant 1 : i32
    %74 = arith.muli %arg0, %c1_i32_41 : i32
    %75 = arith.addi %74, %arg2 : i32
    %c256_i32 = arith.constant 256 : i32
    %76 = arith.muli %75, %c256_i32 : i32
    %c256_i32_42 = arith.constant 256 : i32
    %77 = arith.addi %76, %c256_i32_42 : i32
    %c256_i32_43 = arith.constant 256 : i32
    %78 = arith.cmpi sle, %77, %c256_i32_43 : i32
    %79 = arith.extui %78 : i1 to i32
    %c0_i32_44 = arith.constant 0 : i32
    %80 = arith.cmpi ne, %79, %c0_i32_44 : i32
    scf.if %80 {
      %c0_48 = arith.constant 0 : index
      %c0_49 = arith.constant 0 : index
      %87 = vector.load %arg7[%c0_48, %c0_49] : memref<2x128xf32, #tpu.memory_space<vmem>>, vector<2x128xf32>
      %88 = arith.addf %87, %73 : vector<2x128xf32>
      %c0_50 = arith.constant 0 : index
      %c0_51 = arith.constant 0 : index
      %89 = vector.load %arg7[%c0_50, %c0_51] : memref<2x128xf32, #tpu.memory_space<vmem>>, vector<2x128xf32>
      tpu.vector_store %arg7[%c0_50, %c0_51], %88 {strides = array<i32>} : memref<2x128xf32, #tpu.memory_space<vmem>>, vector<2x128xf32>,
    } else {
    }
    %true = arith.constant true
    %81 = arith.xori %78, %true : i1
    %82 = arith.extui %81 : i1 to i32
    %c0_i32_45 = arith.constant 0 : i32
    %83 = arith.cmpi ne, %82, %c0_i32_45 : i32
    scf.if %83 {
      %87 = tpu.iota {dimensions = array<i32: 0>} : vector<2x128xi32>
      %c128_i32 = arith.constant 128 : i32
      %88 = vector.broadcast %c128_i32 : i32 to vector<2x128xi32>
      %89 = arith.muli %87, %88 : vector<2x128xi32>
      %90 = vector.broadcast %76 : i32 to vector<2x128xi32>
      %91 = arith.addi %90, %89 : vector<2x128xi32>
      %92 = tpu.iota {dimensions = array<i32: 1>} : vector<2x128xi32>
      %93 = arith.addi %91, %92 : vector<2x128xi32>
      %c0_48 = arith.constant 0 : index
      %c0_49 = arith.constant 0 : index
      %94 = vector.load %arg7[%c0_48, %c0_49] : memref<2x128xf32, #tpu.memory_space<vmem>>, vector<2x128xf32>
      %c256_i32_50 = arith.constant 256 : i32
      %95 = vector.broadcast %c256_i32_50 : i32 to vector<2x128xi32>
      %96 = arith.cmpi slt, %93, %95 : vector<2x128xi32>
      %cst_51 = arith.constant 0.000000e+00 : f32
      %97 = vector.broadcast %cst_51 : f32 to vector<2x128xf32>
      %98 = arith.select %96, %73, %97 : vector<2x128xi1>, vector<2x128xf32>
      %99 = arith.addf %94, %98 : vector<2x128xf32>
      %c0_52 = arith.constant 0 : index
      %c0_53 = arith.constant 0 : index
      %100 = vector.load %arg7[%c0_52, %c0_53] : memref<2x128xf32, #tpu.memory_space<vmem>>, vector<2x128xf32>
      tpu.vector_store %arg7[%c0_52, %c0_53], %99 {strides = array<i32>} : memref<2x128xf32, #tpu.memory_space<vmem>>, vector<2x128xf32>,
    } else {
    }
    %c0_i32_46 = arith.constant 0 : i32
    %84 = arith.cmpi eq, %arg2, %c0_i32_46 : i32
    %85 = arith.extui %84 : i1 to i32
    %c0_i32_47 = arith.constant 0 : i32
    %86 = arith.cmpi ne, %85, %c0_i32_47 : i32
    scf.if %86 {
      %c0_48 = arith.constant 0 : index
      %c0_49 = arith.constant 0 : index
      %87 = vector.load %arg7[%c0_48, %c0_49] : memref<2x128xf32, #tpu.memory_space<vmem>>, vector<2x128xf32>
      %88 = vector.shape_cast %87 : vector<2x128xf32> to vector<1x2x128xf32>
      %cst_50 = arith.constant dense<0.000000e+00> : vector<1xf32>
      %89 = vector.multi_reduction <add>, %88, %cst_50 [1, 2] : vector<1x2x128xf32> to vector<1xf32>
      %90 = vector.shape_cast %89 : vector<1xf32> to vector<1x1x1xf32>
      %91 = vector.extract %90[0, 0, 0] : f32 from vector<1x1x1xf32>
      %92 = vector.broadcast %91 : f32 to vector<1x1x1x1xf32>
      %c0_51 = arith.constant 0 : index
      %c0_52 = arith.constant 0 : index
      %c0_53 = arith.constant 0 : index
      %c0_54 = arith.constant 0 : index
      %93 = vector.load %arg6[%c0_51, %c0_52, %c0_53, %c0_54] : memref<1x1x1x1xf32, #tpu.memory_space<vmem>>, vector<1x1x1x1xf32>
      tpu.vector_store %arg6[%c0_51, %c0_52, %c0_53, %c0_54], %92 {strides = array<i32>} : memref<1x1x1x1xf32, #tpu.memory_space<vmem>>, vector<1x1x1x1xf32>,
    } else {
    }
    return
  }
  func.func @transform_0(%arg0: i32, %arg1: i32, %arg2: i32) -> (i32, i32, i32, i32) {
    %c1_i32 = arith.constant 1 : i32
    %0 = arith.muli %arg0, %c1_i32 : i32
    %1 = arith.addi %0, %arg2 : i32
    %c0_i32 = arith.constant 0 : i32
    %2 = arith.minsi %1, %c0_i32 : i32
    %c0_i32_0 = arith.constant 0 : i32
    %c0_i32_1 = arith.constant 0 : i32
    %c0_i32_2 = arith.constant 0 : i32
    return %arg1, %c0_i32_0, %2, %c0_i32_1 : i32, i32, i32, i32
  }
  func.func @transform_1(%arg0: i32, %arg1: i32, %arg2: i32) -> (i32, i32, i32, i32) {
    %c1_i32 = arith.constant 1 : i32
    %0 = arith.muli %arg0, %c1_i32 : i32
    %1 = arith.addi %0, %arg2 : i32
    %c0_i32 = arith.constant 0 : i32
    %2 = arith.minsi %1, %c0_i32 : i32
    %c0_i32_0 = arith.constant 0 : i32
    %c0_i32_1 = arith.constant 0 : i32
    %c0_i32_2 = arith.constant 0 : i32
    return %arg1, %c0_i32_0, %2, %c0_i32_1 : i32, i32, i32, i32
  }
  func.func @transform_2(%arg0: i32, %arg1: i32, %arg2: i32) -> i32 {
    %c0_i32 = arith.constant 0 : i32
    %c0_i32_0 = arith.constant 0 : i32
    return %c0_i32 : i32
  }
  func.func @transform_3(%arg0: i32, %arg1: i32, %arg2: i32) -> (i32, i32, i32, i32) {
    %c0_i32 = arith.constant 0 : i32
    %c0_i32_0 = arith.constant 0 : i32
    %c0_i32_1 = arith.constant 0 : i32
    return %arg0, %arg1, %c0_i32, %c0_i32_0 : i32, i32, i32, i32
  }
}

</mosaic_0001>

<llo_original>
// kernel: tpu_custom_call.1
$region0: #{tpu_custom_call.1}
  #allocation0 [shape = 'u32[]', space=smem, size = 0x4, offset = 0x4, fixed_abs, tag = 'smem constant byte address 0x4 - core index']
  #allocation1 [shape = 'u32[72,128]{1,0:T(1,128)}', space=vmem, size = 0x9000, scoped, tag = 'internal scratch']
  #allocation2 [shape = 'f32[2,128]{1,0:T(2,128)}', space=vmem, size = 0x400, scoped, tag = 'scratch operand']
  %s0 = inlined_call_operand.hbm [shape: f32[2,4,2,128], index: 0, kind: input, shape index: {}]
  %s1 = inlined_call_operand.hbm [shape: s32[2,1,2,128], index: 1, kind: input, shape index: {}]
  %s2 = inlined_call_operand.vmem [shape: f32[4], index: 2, kind: input, shape index: {}]
  %s3 = inlined_call_operand.vmem [shape: f32[1,2,1,1], index: 3, kind: output, shape index: {}]
  %s4 = sld [smem:[#allocation0]]
  $region73: #{tpu_custom_call.1} parent=0
    _
  %s6 = ssub.s32 1, %s4
  %s7 = scalar_select 0, %s6, %s4
  $region1: #{tpu_custom_call.1} parent=0
    #allocation3 [shape = 'u8[8192]{0}', space=vmem, size = 0x2000, scoped, tag = 'input window, operand 0']
    #allocation4 [shape = 's32[2]{0}', space=sflag, size = 0x8, scoped, tag = 'scoped memory for tpu_custom_call.1']
    #allocation5 [shape = 's32[2]{0}', space=sflag, size = 0x8, scoped, tag = 'scoped memory for tpu_custom_call.1']
    #allocation6 [shape = 'u8[2048]{0}', space=vmem, size = 0x800, scoped, tag = 'input window, operand 1']
    #allocation7 [shape = 's32[2]{0}', space=sflag, size = 0x8, scoped, tag = 'scoped memory for tpu_custom_call.1']
    #allocation8 [shape = 'u8[512]{0}', space=smem, size = 0x200, scoped, tag = 'input window, operand 2, single buffered']
    %8 = vsyncpa [#allocation4], 0
    %s9 = scalar_lea.sflag [#allocation4], 1
    %10 = vsyncpa %s9, 0
    %11 = vsyncpa [#allocation7], 0
    %s12 = scalar_lea.sflag [#allocation7], 1
    %13 = vsyncpa %s12, 0
    %14 = vsyncpa [#allocation5], 0
    loop: start=0, step=1, limit=4
    $region2: #{tpu_custom_call.1} parent=1 // loop_pre_header
      _
    $region3: #{tpu_custom_call.1} parent=1 // loop_header
      %s16 = sphi 0, %s20
      %p17 = scmp.ge.s32.totalorder %s16, 4
      %s23 = sphi 0, %s42
      %s24 = sphi 0, %s38
      %s25 = sphi 0, %s34
      %s26 = sphi 0, %s23
      %s27 = sphi 0, %s24
      %s28 = sphi 0, %s25
      %s29 = sphi 0, %s26
      %s30 = sphi 0, %s27
      %s31 = sphi 0, %s28
      %s53 = sphi 0, %s55
      %s56 = sphi 0, %s53
      %s57 = sphi 0, %s56
      %s73 = sphi 0, %s57
      %s87 = sphi 0, %s89
      %s90 = sphi 0, %s87
      %s91 = sphi 0, %s90
      %s107 = sphi 0, %s91
      %s111 = sphi 0, %s111
      %s113 = sphi 0, %s111
      %s114 = sphi 0, %s113
      %s128 = sphi 0, %s114
      %s136 = sphi 0, %s138
      %s139 = sphi 0, %s136
      %s140 = sphi 0, %s139
      %s156 = sphi 0, %s140
    $region4: #{tpu_custom_call.1} parent=1 // loop_header_branch
      %19 = sbr.rel (%p17) target = $region8
    $region5: #{tpu_custom_call.1} parent=1 // loop_body
      %s21 = ssub.s32 %s16, 1
      %s22 = ssub.s32 %s16, 2
      %s32 = sadd.s32 1, %s25
      %p33 = scmp.ge.s32.totalorder %s32, 1
      %s34 = scalar_select %p33, 0, %s32
      %s35 = sadd.s32 1, %s24
      %s36 = scalar_select %p33, %s35, %s24
      %p37 = scmp.ge.s32.totalorder %s36, 2
      %s38 = scalar_select %p37, 0, %s36
      %s39 = sadd.s32 1, %s23
      %s40 = scalar_select %p37, %s39, %s23
      %p41 = scmp.ge.s32.totalorder %s40, 1
      %s42 = scalar_select %p41, 0, %s40
      %s43 = sadd.s32 %s23, %s25
      %p44 = scmp.lt.s32.totalorder %s43, 0
      %s45 = scalar_select %p44, %s43, 0
      %s46 = sadd.s32 %s42, %s34
      %p47 = scmp.lt.s32.totalorder %s46, 0
      %s48 = scalar_select %p47, %s46, 0
      %s49 = ssub.s32 %s24, %s38
      %s50 = ssub.s32 %s45, %s48
      %s51 = sor.u32 %s49, %s50
      %p52 = scmp.eq.s32.totalorder %s51, 0
      %s54 = sadd.s32 %s53, 1
      %s55 = scalar_select %p52, %s53, %s54
      %p58 = pneg %p52
      %p59 = scmp.eq.s32.totalorder %s16, 1
      %p60 = por %p58, %p59
      %p61 = scmp.ne.s32.totalorder %s53, %s56
      %p62 = scmp.eq.s32.totalorder %s16, 0
      %p63 = por %p61, %p62
      %p64 = scmp.ne.s32.totalorder %s53, %s56
      %p65 = scmp.eq.s32.totalorder %s21, 1
      %p66 = por %p64, %p65
      %p67 = scmp.ne.s32.totalorder %s56, %s57
      %p68 = scmp.eq.s32.totalorder %s21, 0
      %p69 = por %p67, %p68
      %p70 = scmp.ne.s32.totalorder %s56, %s57
      %p71 = scmp.eq.s32.totalorder %s22, 1
      %p72 = por %p70, %p71
      %p74 = scmp.ne.s32.totalorder %s57, %s73
      %p75 = scmp.eq.s32.totalorder %s22, 0
      %p76 = por %p74, %p75
      %s77 = sadd.s32 %s23, %s25
      %p78 = scmp.lt.s32.totalorder %s77, 0
      %s79 = scalar_select %p78, %s77, 0
      %s80 = sadd.s32 %s42, %s34
      %p81 = scmp.lt.s32.totalorder %s80, 0
      %s82 = scalar_select %p81, %s80, 0
      %s83 = ssub.s32 %s24, %s38
      %s84 = ssub.s32 %s79, %s82
      %s85 = sor.u32 %s83, %s84
      %p86 = scmp.eq.s32.totalorder %s85, 0
      %s88 = sadd.s32 %s87, 1
      %s89 = scalar_select %p86, %s87, %s88
      %p92 = pneg %p86
      %p93 = scmp.eq.s32.totalorder %s16, 1
      %p94 = por %p92, %p93
      %p95 = scmp.ne.s32.totalorder %s87, %s90
      %p96 = scmp.eq.s32.totalorder %s16, 0
      %p97 = por %p95, %p96
      %p98 = scmp.ne.s32.totalorder %s87, %s90
      %p99 = scmp.eq.s32.totalorder %s21, 1
      %p100 = por %p98, %p99
      %p101 = scmp.ne.s32.totalorder %s90, %s91
      %p102 = scmp.eq.s32.totalorder %s21, 0
      %p103 = por %p101, %p102
      %p104 = scmp.ne.s32.totalorder %s90, %s91
      %p105 = scmp.eq.s32.totalorder %s22, 1
      %p106 = por %p104, %p105
      %p108 = scmp.ne.s32.totalorder %s91, %s107
      %p109 = scmp.eq.s32.totalorder %s22, 0
      %p110 = por %p108, %p109
      %s112 = sadd.s32 %s111, 1
      %p115 = scmp.eq.s32.totalorder %s16, 1
      %p116 = scmp.ne.s32.totalorder %s111, %s113
      %p117 = scmp.eq.s32.totalorder %s16, 0
      %p118 = por %p116, %p117
      %p119 = scmp.ne.s32.totalorder %s111, %s113
      %p120 = scmp.eq.s32.totalorder %s21, 1
      %p121 = por %p119, %p120
      %p122 = scmp.ne.s32.totalorder %s113, %s114
      %p123 = scmp.eq.s32.totalorder %s21, 0
      %p124 = por %p122, %p123
      %p125 = scmp.ne.s32.totalorder %s113, %s114
      %p126 = scmp.eq.s32.totalorder %s22, 1
      %p127 = por %p125, %p126
      %p129 = scmp.ne.s32.totalorder %s114, %s128
      %p130 = scmp.eq.s32.totalorder %s22, 0
      %p131 = por %p129, %p130
      %s132 = ssub.s32 %s23, %s42
      %s133 = ssub.s32 %s24, %s38
      %s134 = sor.u32 %s132, %s133
      %p135 = scmp.eq.s32.totalorder %s134, 0
      %s137 = sadd.s32 %s136, 1
      %s138 = scalar_select %p135, %s136, %s137
      %p141 = pneg %p135
      %p142 = scmp.eq.s32.totalorder %s16, 1
      %p143 = por %p141, %p142
      %p144 = scmp.ne.s32.totalorder %s136, %s139
      %p145 = scmp.eq.s32.totalorder %s16, 0
      %p146 = por %p144, %p145
      %p147 = scmp.ne.s32.totalorder %s136, %s139
      %p148 = scmp.eq.s32.totalorder %s21, 1
      %p149 = por %p147, %p148
      %p150 = scmp.ne.s32.totalorder %s139, %s140
      %p151 = scmp.eq.s32.totalorder %s21, 0
      %p152 = por %p150, %p151
      %p153 = scmp.ne.s32.totalorder %s139, %s140
      %p154 = scmp.eq.s32.totalorder %s22, 1
      %p155 = por %p153, %p154
      %p157 = scmp.ne.s32.totalorder %s140, %s156
      %p158 = scmp.eq.s32.totalorder %s22, 0
      %p159 = por %p157, %p158
      %p160 = scmp.le.s32.totalorder 1, %s16
      %p161 = scmp.lt.s32.totalorder %s16, 3
      %p162 = pnand %p160, %p161
      %p163 = pneg %p162
      // Predicated region
      $region9: #{tpu_custom_call.1} parent=5 // pred_check
        _
      $region10: #{tpu_custom_call.1} parent=5 // pred_check_branch
        %165 = sbr.rel (%p162) target = $region12
      $region11: #{tpu_custom_call.1} parent=5 // pred_region
        %s166 = ssub.s32 %s16, 1
        // Predicated region
        $region13: #{tpu_custom_call.1} parent=11 // pred_check
          %p167 = pneg %p124
        $region14: #{tpu_custom_call.1} parent=11 // pred_check_branch
          %169 = sbr.rel (%p167) target = $region16
        $region15: #{tpu_custom_call.1} parent=11 // pred_region
          %171 = vsyncadd [#allocation5], 0
          %s173 = sshll.u32 %s2, 4
          %s174 = int_to_ptr.vmem [resolvable:$true] %s173
          %176 = dma.vmem_to_smem %s174, 16, [#allocation8], [#allocation5]
        $region16: #{tpu_custom_call.1} parent=11 // pred_fallthru
          _
      $region12: #{tpu_custom_call.1} parent=5 // pred_fallthru
        _
      %p177 = scmp.lt.s32.totalorder %s16, 2
      // Predicated region
      $region17: #{tpu_custom_call.1} parent=5 // pred_check
        %p178 = pneg %p177
      $region18: #{tpu_custom_call.1} parent=5 // pred_check_branch
        %180 = sbr.rel (%p178) target = $region20
      $region19: #{tpu_custom_call.1} parent=5 // pred_region
        // Predicated region
        $region21: #{tpu_custom_call.1} parent=19 // pred_check
          %p181 = pneg %p63
        $region22: #{tpu_custom_call.1} parent=19 // pred_check_branch
          %183 = sbr.rel (%p181) target = $region24
        $region23: #{tpu_custom_call.1} parent=19 // pred_region
          %s184 = sand.u32 %s53, 1
          %s185 = scalar_lea.sflag [#allocation4], %s184
          %s186 = sand.u32 %s53, 1
          %s187 = smul.addr %s186, 8
          %s188 = scalar_lea.vmem [#allocation3], %s187
          %s189 = sadd.s32 %s23, %s25
          %p190 = scmp.lt.s32.totalorder %s189, 0
          %s191 = scalar_select %p190, %s189, 0
          %193 = vsyncadd %s185, 0
          %s194 = smul.addr %s24, 4
          %s195 = sadd.s32 %s191, %s194
          %s196 = smul.addr %s195, 2
          %s197 = scalar_lea.hbm %s0, %s196
          %s198 = sshll.u32 %s197, 4
          %s199 = int_to_ptr.hbm [resolvable:$true] %s198
          %s200 = sshll.u32 %s188, 4
          %s201 = int_to_ptr.vmem [resolvable:$true] %s200
          %206 = dma.hbm_to_vmem [thread:$0]  %s199, 128, %s201, %s185, 32, 32, 2
        $region24: #{tpu_custom_call.1} parent=19 // pred_fallthru
          _
        // Predicated region
        $region25: #{tpu_custom_call.1} parent=19 // pred_check
          %p207 = pneg %p97
        $region26: #{tpu_custom_call.1} parent=19 // pred_check_branch
          %209 = sbr.rel (%p207) target = $region28
        $region27: #{tpu_custom_call.1} parent=19 // pred_region
          %s210 = sand.u32 %s87, 1
          %s211 = scalar_lea.sflag [#allocation7], %s210
          %s212 = sand.u32 %s87, 1
          %s213 = smul.addr %s212, 2
          %s214 = scalar_lea.vmem [#allocation6], %s213
          %s215 = sadd.s32 %s23, %s25
          %p216 = scmp.lt.s32.totalorder %s215, 0
          %s217 = scalar_select %p216, %s215, 0
          %219 = vsyncadd %s211, 0
          %s220 = sadd.s32 %s217, %s24
          %s221 = smul.addr %s220, 2
          %s222 = scalar_lea.hbm %s1, %s221
          %s224 = sshll.u32 %s222, 4
          %s225 = int_to_ptr.hbm [resolvable:$true] %s224
          %s226 = sshll.u32 %s214, 4
          %s227 = int_to_ptr.vmem [resolvable:$true] %s226
          %229 = dma.hbm_to_vmem [thread:$0]  %s225, 32, %s227, %s211
        $region28: #{tpu_custom_call.1} parent=19 // pred_fallthru
          _
      $region20: #{tpu_custom_call.1} parent=5 // pred_fallthru
        _
      %p230 = scmp.le.s32.totalorder 1, %s16
      %p231 = scmp.lt.s32.totalorder %s16, 3
      %p232 = pnand %p230, %p231
      %p233 = pneg %p232
      // Predicated region
      $region29: #{tpu_custom_call.1} parent=5 // pred_check
        _
      $region30: #{tpu_custom_call.1} parent=5 // pred_check_branch
        %235 = sbr.rel (%p232) target = $region32
      $region31: #{tpu_custom_call.1} parent=5 // pred_region
        %s236 = ssub.s32 %s16, 1
        %s237 = sand.u32 %s56, 1
        %s238 = scalar_lea.sflag [#allocation4], %s237
        %s239 = sand.u32 %s56, 1
        %s240 = smul.addr %s239, 8
        %s241 = scalar_lea.vmem [#allocation3], %s240
        // Predicated region
        $region33: #{tpu_custom_call.1} parent=31 // pred_check
          %p242 = pneg %p69
        $region34: #{tpu_custom_call.1} parent=31 // pred_check_branch
          %244 = sbr.rel (%p242) target = $region36
        $region35: #{tpu_custom_call.1} parent=31 // pred_region
          %246 = dma.done %s238, 128
        $region36: #{tpu_custom_call.1} parent=31 // pred_fallthru
          _
        %s247 = sand.u32 %s90, 1
        %s248 = scalar_lea.sflag [#allocation7], %s247
        %s249 = sand.u32 %s90, 1
        %s250 = smul.addr %s249, 2
        %s251 = scalar_lea.vmem [#allocation6], %s250
        // Predicated region
        $region37: #{tpu_custom_call.1} parent=31 // pred_check
          %p252 = pneg %p103
        $region38: #{tpu_custom_call.1} parent=31 // pred_check_branch
          %254 = sbr.rel (%p252) target = $region40
        $region39: #{tpu_custom_call.1} parent=31 // pred_region
          %256 = dma.done %s248, 32
        $region40: #{tpu_custom_call.1} parent=31 // pred_fallthru
          _
        // Predicated region
        $region41: #{tpu_custom_call.1} parent=31 // pred_check
          %p257 = pneg %p124
        $region42: #{tpu_custom_call.1} parent=31 // pred_check_branch
          %259 = sbr.rel (%p257) target = $region44
        $region43: #{tpu_custom_call.1} parent=31 // pred_region
          %261 = dma.done [#allocation5], 16
        $region44: #{tpu_custom_call.1} parent=31 // pred_fallthru
          _
        %262 = sfence
        %s263 = sand.u32 %s56, 1
        %s264 = scalar_lea.sflag [#allocation4], %s263
        %s265 = sand.u32 %s56, 1
        %s266 = smul.addr %s265, 8
        %s267 = scalar_lea.vmem [#allocation3], %s266
        %p268 = pneg %p69
        %p269 = pneg %p66
        %s270 = sand.u32 %s90, 1
        %s271 = scalar_lea.sflag [#allocation7], %s270
        %s272 = sand.u32 %s90, 1
        %s273 = smul.addr %s272, 2
        %s274 = scalar_lea.vmem [#allocation6], %s273
        %p275 = pneg %p103
        %p276 = pneg %p100
        %p277 = pneg %p124
        %p278 = pneg %p121
        %p279 = pneg %p152
        %p280 = pneg %p149
        %p281 = scmp.lt.s32.totalorder %s26, 0
        %s282 = scalar_select %p281, %s26, 0
        %p283 = scmp.lt.s32.totalorder %s27, 1
        %s284 = scalar_select %p283, %s27, 1
        %s285 = smul.addr %s282, 2
        %s286 = sadd.s32 %s284, %s285
        %s287 = scalar_lea.vmem %s3, %s286
        %s288 = sadd.s32 %s26, %s28
        %p289 = scmp.lt.s32.totalorder %s288, 0
        %s290 = scalar_select %p289, %s288, 0
        %s291 = sadd.s32 %s26, %s28
        %p292 = scmp.lt.s32.totalorder %s291, 0
        %s293 = scalar_select %p292, %s291, 0
        %p294 = scmp.lt.s32.totalorder %s26, 0
        %s295 = scalar_select %p294, %s26, 0
        %p296 = scmp.lt.s32.totalorder %s27, 1
        %s297 = scalar_select %p296, %s27, 1
        %s298 = smul.addr %s295, 2
        %s299 = sadd.s32 %s297, %s298
        %s300 = scalar_lea.vmem %s3, %s299
        %p301 = scmp.eq.s32.totalorder %s28, 0
        // Predicated region
        $region45: #{tpu_custom_call.1} parent=31 // pred_check
          %p302 = pneg %p301
        $region46: #{tpu_custom_call.1} parent=31 // pred_check_branch
          %304 = sbr.rel (%p302) target = $region48
        $region47: #{tpu_custom_call.1} parent=31 // pred_region
          %305 = vst [vmem:[#allocation2] sm:$0x3] 0.0
        $region48: #{tpu_custom_call.1} parent=31 // pred_fallthru
          _
        %v306 = vld [vmem:[%s251] sm:$0x3]
        %v307 = vld [vmem:[%s241] sm:$0x3]
        %s308 = scalar_lea.vmem %s241, 2 [#allocation3]
        %v309 = vld [vmem:[%s308] sm:$0x3]
        %v310 = vmax.f32 %v307, %v309
        %s311 = scalar_lea.vmem %s241, 4 [#allocation3]
        %v312 = vld [vmem:[%s311] sm:$0x3]
        %v313 = vmax.f32 %v310, %v312
        %s314 = scalar_lea.vmem %s241, 6 [#allocation3]
        %v315 = vld [vmem:[%s314] sm:$0x3]
        %v316 = vmax.f32 %v313, %v315
        %v317 = vsub.f32 %v307, %v316
        %v318 = vmul.f32 %v317, 1.442695
        %v319 = vpow.pop %v318
        %v320 = vadd.f32 %v319, 0.0
        %vm321 = vcmp.eq.s32.totalorder %v306, 0
        %v322 = vsel %vm321, %v307, 0.0
        %s323 = sld [smem:[#allocation8]]
        %v324 = vstv %s323
        %v325 = vsel %vm321, %v324, 0.0
        %v326 = vsub.f32 %v309, %v316
        %v327 = vmul.f32 %v326, 1.442695
        %v328 = vpow.pop %v327
        %v329 = vadd.f32 %v320, %v328
        %vm330 = vcmp.eq.s32.totalorder %v306, 1
        %v331 = vsel %vm330, %v309, %v322
        %s332 = sld [smem:[#allocation8 + $0x1]]
        %v333 = vstv %s332
        %v334 = vsel %vm330, %v333, %v325
        %v335 = vsub.f32 %v312, %v316
        %v336 = vmul.f32 %v335, 1.442695
        %v337 = vpow.pop %v336
        %v338 = vadd.f32 %v329, %v337
        %vm339 = vcmp.eq.s32.totalorder %v306, 2
        %v340 = vsel %vm339, %v312, %v331
        %s341 = sld [smem:[#allocation8 + $0x2]]
        %v342 = vstv %s341
        %v343 = vsel %vm339, %v342, %v334
        %v344 = vsub.f32 %v315, %v316
        %v345 = vmul.f32 %v344, 1.442695
        %v346 = vpow.pop %v345
        %v347 = vadd.f32 %v338, %v346
        %vm348 = vcmp.eq.s32.totalorder %v306, 3
        %v349 = vsel %vm348, %v315, %v340
        %s350 = sld [smem:[#allocation8 + $0x3]]
        %v351 = vstv %s350
        %v352 = vsel %vm348, %v351, %v343
        %v353 = vlog2.pop %v347
        %v354 = vmul.f32 %v353, 0.6931472
        %v355 = vadd.f32 %v316, %v354
        %v356 = vsub.f32 %v349, %v355
        %v357 = vmul.f32 %v356, 1.442695
        %v358 = vpow.pop %v357
        %v359 = vmul.f32 %v356, %v352
        %v360 = vsub.f32 1.0, %v358
        %v361 = vmax.f32 %v360, 0.0
        %v362 = vmul.f32 %v361, %v361
        %v363 = vsub.f32 0.0, %v362
        %v364 = vmul.f32 %v363, %v359
        %s365 = sadd.s32 %s26, %s28
        %s366 = smul.u32 %s365, 256
        %s367 = sadd.s32 %s366, 256
        %p368 = scmp.le.s32.totalorder %s367, 256
        // Predicated region
        $region49: #{tpu_custom_call.1} parent=31 // pred_check
          %p369 = pneg %p368
        $region50: #{tpu_custom_call.1} parent=31 // pred_check_branch
          %371 = sbr.rel (%p369) target = $region52
        $region51: #{tpu_custom_call.1} parent=31 // pred_region
          %v372 = vld [vmem:[#allocation2] sm:$0x3]
          %v373 = vadd.f32 %v372, %v364
          %374 = vst [vmem:[#allocation2] sm:$0x3] %v373
        $region52: #{tpu_custom_call.1} parent=31 // pred_fallthru
          _
        %p375 = scmp.gt.s32.totalorder %s367, 256
        // Predicated region
        $region53: #{tpu_custom_call.1} parent=31 // pred_check
          %p376 = pneg %p375
        $region54: #{tpu_custom_call.1} parent=31 // pred_check_branch
          %378 = sbr.rel (%p376) target = $region56
        $region55: #{tpu_custom_call.1} parent=31 // pred_region
          %v379 = vlaneseq
          %v380 = vshrl.u32 %v379, 7
          %v381 = vmul.u32 %v380, 128
          %v382 = vstv %s366
          %v383 = vadd.s32 %v382, %v381
          %v384 = vlaneseq
          %v385 = vand.u32 %v384, 127
          %v386 = vadd.s32 %v383, %v385
          %v387 = vld [vmem:[#allocation2] sm:$0x3]
          %vm388 = vcmp.lt.s32.totalorder %v386, 256
          %v389 = vsel %vm388, %v364, 0.0
          %v390 = vadd.f32 %v387, %v389
          %391 = vst [vmem:[#allocation2] sm:$0x3] %v390
        $region56: #{tpu_custom_call.1} parent=31 // pred_fallthru
          _
        // Predicated region
        $region57: #{tpu_custom_call.1} parent=31 // pred_check
          %p392 = pneg %p301
        $region58: #{tpu_custom_call.1} parent=31 // pred_check_branch
          %394 = sbr.rel (%p392) target = $region60
        $region59: #{tpu_custom_call.1} parent=31 // pred_region
          %v395 = vld [vmem:[#allocation2] sm:$0x3]
          %vm396 = vcmask 1041408
          %v397 = vsel %vm396, %v395, 0.0
          %398 = vadd.xlane.f32.xlu0 %v397
          %v399 = vpop.xlane.xlu0 %398
          %v400 = vrot.slane %v399, 4
          %v401 = vadd.f32 %v399, %v400
          %v402 = vrot.slane %v401, 2
          %v403 = vadd.f32 %v401, %v402
          %v404 = vrot.slane %v403, 1
          %v405 = vadd.f32 %v403, %v404
          %s406 = vtos %v405
          %v407 = vstv %s406
          %vm408 = vcmask 0
          %409 = vst.msk [vmem:[%s300] sm:$0x1] %vm408, %v407
        $region60: #{tpu_custom_call.1} parent=31 // pred_fallthru
          _
        %p410 = scmp.lt.s32.totalorder %s26, 0
        %s411 = scalar_select %p410, %s26, 0
        %p412 = scmp.lt.s32.totalorder %s27, 1
        %s413 = scalar_select %p412, %s27, 1
        %s414 = smul.addr %s411, 2
        %s415 = sadd.s32 %s413, %s414
        %s416 = scalar_lea.vmem %s3, %s415
        // Predicated region
        $region61: #{tpu_custom_call.1} parent=31 // pred_check
          %p417 = pneg %p149
        $region62: #{tpu_custom_call.1} parent=31 // pred_check_branch
          %419 = sbr.rel (%p417) target = $region64
        $region63: #{tpu_custom_call.1} parent=31 // pred_region
          _
        $region64: #{tpu_custom_call.1} parent=31 // pred_fallthru
          _
      $region32: #{tpu_custom_call.1} parent=5 // pred_fallthru
        _
      %p420 = scmp.le.s32.totalorder 2, %s16
      // Predicated region
      $region65: #{tpu_custom_call.1} parent=5 // pred_check
        %p421 = pneg %p420
      $region66: #{tpu_custom_call.1} parent=5 // pred_check_branch
        %423 = sbr.rel (%p421) target = $region68
      $region67: #{tpu_custom_call.1} parent=5 // pred_region
        %s424 = ssub.s32 %s16, 2
        // Predicated region
        $region69: #{tpu_custom_call.1} parent=67 // pred_check
          %p425 = pneg %p155
        $region70: #{tpu_custom_call.1} parent=67 // pred_check_branch
          %427 = sbr.rel (%p425) target = $region72
        $region71: #{tpu_custom_call.1} parent=67 // pred_region
          %p428 = scmp.lt.s32.totalorder %s29, 0
          %s429 = scalar_select %p428, %s29, 0
          %p430 = scmp.lt.s32.totalorder %s30, 1
          %s431 = scalar_select %p430, %s30, 1
          %s432 = smul.addr %s429, 2
          %s433 = sadd.s32 %s431, %s432
          %s434 = scalar_lea.vmem %s3, %s433
        $region72: #{tpu_custom_call.1} parent=67 // pred_fallthru
          _
      $region68: #{tpu_custom_call.1} parent=5 // pred_fallthru
        _
    $region6: #{tpu_custom_call.1} parent=1 // loop_footer
      %s20 = sadd.s32 1, %s16
    $region7: #{tpu_custom_call.1} parent=1 // loop_footer_branch
      %15 = sbr.rel target = $region3
    $region8: #{tpu_custom_call.1} parent=1 // loop_exit
      _
    %435 = vsyncpa [#allocation4], 1
    %s436 = scalar_lea.sflag [#allocation4], 1
    %437 = vsyncpa %s436, 1
    %438 = vsyncpa [#allocation7], 1
    %s439 = scalar_lea.sflag [#allocation7], 1
    %440 = vsyncpa %s439, 1
    %441 = vsyncpa [#allocation5], 1
    %s442 = scalar_lea.sflag [#allocation5], 1
    %443 = vsyncpa %s442, 1

</llo_original>
